<compile_context>
chip_gen: v7x
topology: tpu7x:2x2x1
jax: 0.10.0
libtpu: 0.0.40
codegen_flags: <defaults>
</compile_context>

<pallas_src>
import functools

import jax
import jax.numpy as jnp
from jax.experimental import pallas as pl
from jax.experimental.pallas import tpu as pltpu

_LANE = 128
_MAX_CHUNK_ROWS = 8192   # 4 MiB f32 per input per pipeline buffer


def _round_up(x, m):
    return (x + m - 1) // m * m


def _soft_iou_kernel(pred_ref, mask_ref, inter_ref, s_ref, *,
                     chunk_rows, valid_elems, apply_mask):
    """Grid = (batch_blocks, row_chunks).

    Accumulates per-sample, per-lane partial sums of sigmoid(pred)*mask and
    sigmoid(pred)+mask into the resident (1, bn, 128) output blocks.
    """
    k = pl.program_id(1)

    p = jax.nn.sigmoid(pred_ref[...].astype(jnp.float32))   # (bn, chunk_rows, 128)
    m = mask_ref[...].astype(jnp.float32)

    if apply_mask:
        # The last chunk can be ragged (partial rows from uneven chunking
        # and/or a sub-128 lane tail).  Zero every element whose flattened
        # per-sample index >= CHW; cheap VPU work hidden under the DMA, and it
        # makes the (unspecified) contents of OOB-padded rows harmless.
        row = jax.lax.broadcasted_iota(jnp.int32, p.shape, 1)
        lane = jax.lax.broadcasted_iota(jnp.int32, p.shape, 2)
        elem = (k * chunk_rows + row) * _LANE + lane
        keep = elem < valid_elems
        p = jnp.where(keep, p, 0.0)
        m = jnp.where(keep, m, 0.0)

    # Reduce over the row (sublane-major) axis only: vreg-vreg VPU adds plus a
    # single sublane fold.  The cross-lane (XLU) reduce happens once per
    # sample in the wrapper, never per tile.
    inter_part = jnp.sum(p * m, axis=1)     # (bn, 128)
    s_part = jnp.sum(p + m, axis=1)         # (bn, 128); denominator = s - inter

    @pl.when(k == 0)
    def _():
        inter_ref[...] = inter_part[None]
        s_ref[...] = s_part[None]

    @pl.when(k > 0)
    def _():
        inter_ref[...] += inter_part[None]
        s_ref[...] += s_part[None]


def soft_iou_loss(pred, mask, *, smooth=1.0, max_chunk_rows=_MAX_CHUNK_ROWS):
    """SoftLoULoss.forward: 1 - mean_batch(soft IoU of sigmoid(pred) vs mask).

    pred, mask: NCHW arrays (any float/int/bool dtypes). Returns scalar f32.
    """
    assert pred.shape == mask.shape, (pred.shape, mask.shape)
    n = pred.shape[0]
    chw = 1
    for d in pred.shape[1:]:
        chw *= d

    chw_pad = _round_up(chw, _LANE)
    rows = chw_pad // _LANE

    pred_flat = pred.reshape(n, chw)
    mask_flat = mask.reshape(n, chw)
    if chw_pad != chw:
        # Sub-128 lane tail: pad to the next lane multiple only.  Pad values
        # are irrelevant (the kernel masks every element index >= chw), which
        # also makes integer / bool pred dtypes safe.  Aligned shapes never
        # take this copy.
        # TODO(synk): a manual-DMA (pl.ANY) path could remove even this copy
        # for large lane-unaligned inputs.
        pad = chw_pad - chw
        pred_flat = jnp.pad(pred_flat, ((0, 0), (0, pad)))
        mask_flat = jnp.pad(mask_flat, ((0, 0), (0, pad)))

    if n * rows <= max_chunk_rows:
        # Tiny problem: one grid step over the whole batch (kills per-step
        # fixed overhead).  chunk_rows equals the full row extent, so no
        # (8,128) rounding is needed.
        bn, chunk_rows, n_chunks = n, rows, 1
    else:
        # Streaming HBM-bound path: one sample per batch block, large balanced
        # row chunks (<= 4 MiB f32 per input per pipeline buffer, ~16 MiB
        # double-buffered).  The explicit vmem limit below keeps
        # double-buffering intact on v5e's 16 MiB default scoped VMEM.
        bn = 1
        if rows <= max_chunk_rows:
            chunk_rows, n_chunks = rows, 1
        else:
            n_chunks = pl.cdiv(rows, max_chunk_rows)
            # 32-row multiple satisfies the sublane tiling for int8/bf16/f32.
            chunk_rows = _round_up(pl.cdiv(rows, n_chunks), 32)
    n_blocks = n // bn

    # Mask only when the final chunk is actually ragged.
    apply_mask = (chw_pad != chw) or (n_chunks * chunk_rows != rows)

    pred_r = pred_flat.reshape(n, rows, _LANE)   # free reshape (split last dim)
    mask_r = mask_flat.reshape(n, rows, _LANE)

    kernel = functools.partial(_soft_iou_kernel, chunk_rows=chunk_rows,
                               valid_elems=chw, apply_mask=apply_mask)

    in_spec = pl.BlockSpec((bn, chunk_rows, _LANE), lambda i, k: (i, k, 0))
    out_spec = pl.BlockSpec((1, bn, _LANE), lambda i, k: (i, 0, 0))

    inter_l, s_l = pl.pallas_call(
        kernel,
        # Lane-dense per-sample lane-partial slabs: (batch_blocks, bn, 128).
        out_shape=[jax.ShapeDtypeStruct((n_blocks, bn, _LANE), jnp.float32),
                   jax.ShapeDtypeStruct((n_blocks, bn, _LANE), jnp.float32)],
        grid_spec=pltpu.PrefetchScalarGridSpec(
            num_scalar_prefetch=0,
            grid=(n_blocks, n_chunks),
            in_specs=[in_spec, in_spec],
            out_specs=[out_spec, out_spec],
        ),
        compiler_params=pltpu.CompilerParams(
            # Batch axis is independent (shards across v7x's 2 TensorCores);
            # the row-chunk axis carries the per-sample running reduction.
            # TODO(synk): for N==1 on v7x, split the row-chunk axis into a
            # leading parallel factor of 2 so the second TensorCore isn't idle.
            dimension_semantics=("parallel", "arbitrary"),
            vmem_limit_bytes=48 * 1024 * 1024),
    )(pred_r, mask_r)

    # Per-sample cross-lane reduce, exact divide, and batch mean: tiny work on
    # (N, 128) slabs, done in the wrapper so the kernel never touches the XLU
    # per tile and the batch grid axis stays parallel.
    inter = jnp.sum(inter_l.reshape(n, _LANE), axis=-1)
    s = jnp.sum(s_l.reshape(n, _LANE), axis=-1)
    ratio = (inter + smooth) / (s - inter + smooth)
    return 1.0 - jnp.mean(ratio)


def _reference(pred, mask, smooth=1.0):
    p = jax.nn.sigmoid(pred.astype(jnp.float32))
    m = mask.astype(jnp.float32)
    axes = tuple(range(1, pred.ndim))
    inter = jnp.sum(p * m, axis=axes)
    ps = jnp.sum(p, axis=axes)
    ms = jnp.sum(m, axis=axes)
    ratio = (inter + smooth) / (ps + ms - inter + smooth)
    return 1.0 - jnp.mean(ratio)


if __name__ == "__main__":
    key = jax.random.PRNGKey(0)
    k1, k2, k3, k4, k5, k6, k7, k8 = jax.random.split(key, 8)

    def check(pred, mask, **kw):
        loss = soft_iou_loss(pred, mask, **kw)
        jax.block_until_ready(loss)
        ref = _reference(pred, mask)
        assert jnp.allclose(loss, ref, rtol=1e-4, atol=1e-5), (loss, ref)

    # 1) Small NCHW (module-typical toy size): single-step whole-batch path.
    pred = jax.random.normal(k1, (2, 4, 16, 16), dtype=jnp.float32)
    mask = (jax.random.uniform(k2, (2, 4, 16, 16)) > 0.5).astype(jnp.float32)
    check(pred, mask)

    # 2) Odd spatial size + bf16 logits: lane-tail padding + in-kernel masking.
    pred = jax.random.normal(k3, (2, 3, 17, 23), dtype=jnp.bfloat16)
    mask = (jax.random.uniform(k4, (2, 3, 17, 23)) > 0.5).astype(jnp.float32)
    check(pred, mask)

    # 3) Larger sample: chunked streaming path, zero-copy (no padding at all).
    pred = jax.random.normal(k5, (2, 1, 768, 768), dtype=jnp.float32)
    mask = (jax.random.uniform(k6, (2, 1, 768, 768)) > 0.5).astype(jnp.float32)
    check(pred, mask)

    # 4) Force multi-chunk accumulation + ragged-row masking at a small size
    #    (rows=75, chunk_rows=32 -> 3 chunks, last one partially out of range).
    pred = jax.random.normal(k7, (2, 1, 96, 100), dtype=jnp.float32)
    mask = (jax.random.uniform(k8, (2, 1, 96, 100)) > 0.5).astype(jnp.float32)
    check(pred, mask, max_chunk_rows=32)

    print("KERNEL_OK")
</pallas_src>

<mosaic_0001>
module attributes {stable_mosaic.version = 11 : i64} {
  func.func @_soft_iou_kernel(%arg0: i32, %arg1: i32, %arg2: memref<2x8x128xf32, #tpu.memory_space<vmem>>, %arg3: memref<2x8x128xf32, #tpu.memory_space<vmem>>, %arg4: memref<1x2x128xf32, #tpu.memory_space<vmem>>, %arg5: memref<1x2x128xf32, #tpu.memory_space<vmem>>) attributes {dimension_semantics = [#tpu.dimension_semantics<parallel>, #tpu.dimension_semantics<arbitrary>], iteration_bounds = array<i64: 1, 1>, scalar_prefetch = 0 : i64, scratch_operands = 0 : i64, tpu.core_type = #tpu.core_type<tc>, window_params = [{transform_indices = @transform_0, window_bounds = array<i64: 2, 8, 128>}, {transform_indices = @transform_1, window_bounds = array<i64: 2, 8, 128>}, {transform_indices = @transform_2, window_bounds = array<i64: 1, 2, 128>}, {transform_indices = @transform_3, window_bounds = array<i64: 1, 2, 128>}]} {
    %c0 = arith.constant 0 : index
    %c0_0 = arith.constant 0 : index
    %c0_1 = arith.constant 0 : index
    %0 = vector.load %arg2[%c0, %c0_0, %c0_1] : memref<2x8x128xf32, #tpu.memory_space<vmem>>, vector<2x8x128xf32>
    %1 = arith.negf %0 : vector<2x8x128xf32>
    %2 = math.exp %1 : vector<2x8x128xf32>
    %cst = arith.constant 1.000000e+00 : f32
    %3 = vector.broadcast %cst : f32 to vector<2x8x128xf32>
    %4 = arith.addf %3, %2 : vector<2x8x128xf32>
    %5 = arith.divf %3, %4 : vector<2x8x128xf32>
    %c0_2 = arith.constant 0 : index
    %c0_3 = arith.constant 0 : index
    %c0_4 = arith.constant 0 : index
    %6 = vector.load %arg3[%c0_2, %c0_3, %c0_4] : memref<2x8x128xf32, #tpu.memory_space<vmem>>, vector<2x8x128xf32>
    %7 = arith.mulf %5, %6 : vector<2x8x128xf32>
    %cst_5 = arith.constant dense<0.000000e+00> : vector<2x128xf32>
    %8 = vector.multi_reduction <add>, %7, %cst_5 [1] : vector<2x8x128xf32> to vector<2x128xf32>
    %9 = arith.addf %5, %6 : vector<2x8x128xf32>
    %cst_6 = arith.constant dense<0.000000e+00> : vector<2x128xf32>
    %10 = vector.multi_reduction <add>, %9, %cst_6 [1] : vector<2x8x128xf32> to vector<2x128xf32>
    %c0_i32 = arith.constant 0 : i32
    %11 = arith.cmpi eq, %arg1, %c0_i32 : i32
    %12 = arith.extui %11 : i1 to i32
    %c0_i32_7 = arith.constant 0 : i32
    %13 = arith.cmpi ne, %12, %c0_i32_7 : i32
    scf.if %13 {
      %17 = vector.shape_cast %8 : vector<2x128xf32> to vector<1x2x128xf32>
      %c0_10 = arith.constant 0 : index
      %c0_11 = arith.constant 0 : index
      %c0_12 = arith.constant 0 : index
      %18 = vector.load %arg4[%c0_10, %c0_11, %c0_12] : memref<1x2x128xf32, #tpu.memory_space<vmem>>, vector<1x2x128xf32>
      tpu.vector_store %arg4[%c0_10, %c0_11, %c0_12], %17 {strides = array<i32>} : memref<1x2x128xf32, #tpu.memory_space<vmem>>, vector<1x2x128xf32>,
      %19 = vector.shape_cast %10 : vector<2x128xf32> to vector<1x2x128xf32>
      %c0_13 = arith.constant 0 : index
      %c0_14 = arith.constant 0 : index
      %c0_15 = arith.constant 0 : index
      %20 = vector.load %arg5[%c0_13, %c0_14, %c0_15] : memref<1x2x128xf32, #tpu.memory_space<vmem>>, vector<1x2x128xf32>
      tpu.vector_store %arg5[%c0_13, %c0_14, %c0_15], %19 {strides = array<i32>} : memref<1x2x128xf32, #tpu.memory_space<vmem>>, vector<1x2x128xf32>,
    } else {
    }
    %c0_i32_8 = arith.constant 0 : i32
    %14 = arith.cmpi sgt, %arg1, %c0_i32_8 : i32
    %15 = arith.extui %14 : i1 to i32
    %c0_i32_9 = arith.constant 0 : i32
    %16 = arith.cmpi ne, %15, %c0_i32_9 : i32
    scf.if %16 {
      %c0_10 = arith.constant 0 : index
      %c0_11 = arith.constant 0 : index
      %c0_12 = arith.constant 0 : index
      %17 = vector.load %arg4[%c0_10, %c0_11, %c0_12] : memref<1x2x128xf32, #tpu.memory_space<vmem>>, vector<1x2x128xf32>
      %18 = vector.shape_cast %8 : vector<2x128xf32> to vector<1x2x128xf32>
      %19 = arith.addf %17, %18 : vector<1x2x128xf32>
      %c0_13 = arith.constant 0 : index
      %c0_14 = arith.constant 0 : index
      %c0_15 = arith.constant 0 : index
      %20 = vector.load %arg4[%c0_13, %c0_14, %c0_15] : memref<1x2x128xf32, #tpu.memory_space<vmem>>, vector<1x2x128xf32>
      tpu.vector_store %arg4[%c0_13, %c0_14, %c0_15], %19 {strides = array<i32>} : memref<1x2x128xf32, #tpu.memory_space<vmem>>, vector<1x2x128xf32>,
      %c0_16 = arith.constant 0 : index
      %c0_17 = arith.constant 0 : index
      %c0_18 = arith.constant 0 : index
      %21 = vector.load %arg5[%c0_16, %c0_17, %c0_18] : memref<1x2x128xf32, #tpu.memory_space<vmem>>, vector<1x2x128xf32>
      %22 = vector.shape_cast %10 : vector<2x128xf32> to vector<1x2x128xf32>
      %23 = arith.addf %21, %22 : vector<1x2x128xf32>
      %c0_19 = arith.constant 0 : index
      %c0_20 = arith.constant 0 : index
      %c0_21 = arith.constant 0 : index
      %24 = vector.load %arg5[%c0_19, %c0_20, %c0_21] : memref<1x2x128xf32, #tpu.memory_space<vmem>>, vector<1x2x128xf32>
      tpu.vector_store %arg5[%c0_19, %c0_20, %c0_21], %23 {strides = array<i32>} : memref<1x2x128xf32, #tpu.memory_space<vmem>>, vector<1x2x128xf32>,
    } else {
    }
    return
  }
  func.func @transform_0(%arg0: i32, %arg1: i32) -> (i32, i32, i32) {
    %c0_i32 = arith.constant 0 : i32
    %c0_i32_0 = arith.constant 0 : i32
    return %arg0, %arg1, %c0_i32 : i32, i32, i32
  }
  func.func @transform_1(%arg0: i32, %arg1: i32) -> (i32, i32, i32) {
    %c0_i32 = arith.constant 0 : i32
    %c0_i32_0 = arith.constant 0 : i32
    return %arg0, %arg1, %c0_i32 : i32, i32, i32
  }
  func.func @transform_2(%arg0: i32, %arg1: i32) -> (i32, i32, i32) {
    %c0_i32 = arith.constant 0 : i32
    %c0_i32_0 = arith.constant 0 : i32
    %c0_i32_1 = arith.constant 0 : i32
    return %arg0, %c0_i32, %c0_i32_0 : i32, i32, i32
  }
  func.func @transform_3(%arg0: i32, %arg1: i32) -> (i32, i32, i32) {
    %c0_i32 = arith.constant 0 : i32
    %c0_i32_0 = arith.constant 0 : i32
    %c0_i32_1 = arith.constant 0 : i32
    return %arg0, %c0_i32, %c0_i32_0 : i32, i32, i32
  }
}

</mosaic_0001>

<llo_original>
// kernel: tpu_custom_call.1
$region0: #{tpu_custom_call.1}
  #allocation0 [shape = 'u32[]', space=smem, size = 0x4, offset = 0x4, fixed_abs, tag = 'smem constant byte address 0x4 - core index']
  #allocation1 [shape = 'u32[144,128]{1,0:T(1,128)}', space=vmem, size = 0x12000, scoped, tag = 'internal scratch']
  %s0 = inlined_call_operand.hbm [shape: f32[2,8,128], index: 0, kind: input, shape index: {}]
  %s1 = inlined_call_operand.hbm [shape: f32[2,8,128], index: 1, kind: input, shape index: {}]
  %s2 = inlined_call_operand.hbm [shape: f32[1,2,128], index: 2, kind: output, shape index: {0}]
  %s3 = inlined_call_operand.hbm [shape: f32[1,2,128], index: 3, kind: output, shape index: {1}]
  %4 = xla_tuple %s2, %s3
  %s5 = sld [smem:[#allocation0]]
  $region42: #{tpu_custom_call.1} parent=0
    _
  %s7 = ssub.s32 1, %s5
  %s8 = scalar_select 0, %s7, %s5
  $region1: #{tpu_custom_call.1} parent=0
    #allocation2 [shape = 'u8[8192]{0}', space=vmem, size = 0x2000, scoped, tag = 'input window, operand 0, single buffered']
    #allocation3 [shape = 's32[1]{0}', space=sflag, size = 0x4, scoped, tag = 'scoped memory for tpu_custom_call.1']
    #allocation4 [shape = 's32[1]{0}', space=sflag, size = 0x4, scoped, tag = 'scoped memory for tpu_custom_call.1']
    #allocation5 [shape = 'u8[8192]{0}', space=vmem, size = 0x2000, scoped, tag = 'input window, operand 1, single buffered']
    #allocation6 [shape = 's32[1]{0}', space=sflag, size = 0x4, scoped, tag = 'scoped memory for tpu_custom_call.1']
    #allocation7 [shape = 'u8[1024]{0}', space=vmem, size = 0x400, scoped, tag = 'output window, operand 0, single buffered']
    #allocation8 [shape = 'u8[1024]{0}', space=vmem, size = 0x400, scoped, tag = 'output window, operand 1, single buffered']
    #allocation9 [shape = 's32[1]{0}', space=sflag, size = 0x4, scoped, tag = 'scoped memory for tpu_custom_call.1']
    %9 = vsyncpa [#allocation3], 0
    %10 = vsyncpa [#allocation6], 0
    %11 = vsyncpa [#allocation4], 0
    %12 = vsyncpa [#allocation9], 0
    // Predicated region
    $region2: #{tpu_custom_call.1} parent=1 // pred_check
      _
    $region3: #{tpu_custom_call.1} parent=1 // pred_check_branch
      %14 = sbr.rel (0) target = $region5
    $region4: #{tpu_custom_call.1} parent=1 // pred_region
      %s16 = ssub.s32 256, 256
      %17 = vsyncadd [#allocation3], %s16
      %s18 = sshll.u32 [#allocation2], 4
      %s19 = int_to_ptr.vmem [resolvable:$true] %s18
      %24 = dma.hbm_to_vmem [thread:$0]  %s0, 256, %s19, [#allocation3], 128, 128, 8
    $region5: #{tpu_custom_call.1} parent=1 // pred_fallthru
      _
    // Predicated region
    $region6: #{tpu_custom_call.1} parent=1 // pred_check
      _
    $region7: #{tpu_custom_call.1} parent=1 // pred_check_branch
      %26 = sbr.rel (0) target = $region9
    $region8: #{tpu_custom_call.1} parent=1 // pred_region
      %s28 = ssub.s32 256, 256
      %29 = vsyncadd [#allocation6], %s28
      %s30 = sshll.u32 [#allocation5], 4
      %s31 = int_to_ptr.vmem [resolvable:$true] %s30
      %36 = dma.hbm_to_vmem [thread:$0]  %s1, 256, %s31, [#allocation6], 128, 128, 8
    $region9: #{tpu_custom_call.1} parent=1 // pred_fallthru
      _
    // Predicated region
    $region10: #{tpu_custom_call.1} parent=1 // pred_check
      _
    $region11: #{tpu_custom_call.1} parent=1 // pred_check_branch
      %38 = sbr.rel (0) target = $region13
    $region12: #{tpu_custom_call.1} parent=1 // pred_region
      %39 = dma.done [#allocation3], 256
    $region13: #{tpu_custom_call.1} parent=1 // pred_fallthru
      _
    // Predicated region
    $region14: #{tpu_custom_call.1} parent=1 // pred_check
      _
    $region15: #{tpu_custom_call.1} parent=1 // pred_check_branch
      %41 = sbr.rel (0) target = $region17
    $region16: #{tpu_custom_call.1} parent=1 // pred_region
      %42 = dma.done [#allocation6], 256
    $region17: #{tpu_custom_call.1} parent=1 // pred_fallthru
      _
    %v43 = vld [vmem:[#allocation2] sm:$0xff]
    %v44 = vld [vmem:[#allocation2 + $0x8] sm:$0xff]
    %v45 = vxor.u32 %v43, 2147483648
    %v46 = vxor.u32 %v44, 2147483648
    %v47 = vmul.f32 %v45, 1.442695
    %v48 = vpow.pop %v47
    %v49 = vmul.f32 %v46, 1.442695
    %v50 = vpow.pop %v49
    %v51 = vadd.f32 %v48, 1.0
    %v52 = vadd.f32 %v50, 1.0
    %v53 = vrcp.pop %v51
    %v54 = vmul.f32 1.0, %v53
    %v55 = vrcp.pop %v52
    %v56 = vmul.f32 1.0, %v55
    %v57 = vld [vmem:[#allocation5] sm:$0xff]
    %v58 = vld [vmem:[#allocation5 + $0x8] sm:$0xff]
    %v59 = vmul.f32 %v54, %v57
    %v60 = vmul.f32 %v56, %v58
    %v61 = vrot.slane %v59, 4
    %v62 = vadd.f32 %v59, %v61
    %v63 = vrot.slane %v62, 2
    %v64 = vadd.f32 %v62, %v63
    %v65 = vrot.slane %v64, 1
    %v66 = vadd.f32 %v64, %v65
    %v67 = vrot.slane %v60, 4
    %v68 = vadd.f32 %v60, %v67
    %v69 = vrot.slane %v68, 2
    %v70 = vadd.f32 %v68, %v69
    %v71 = vrot.slane %v70, 1
    %v72 = vadd.f32 %v70, %v71
    %v73 = vadd.f32 %v54, %v57
    %v74 = vadd.f32 %v56, %v58
    %v75 = vrot.slane %v73, 4
    %v76 = vadd.f32 %v73, %v75
    %v77 = vrot.slane %v76, 2
    %v78 = vadd.f32 %v76, %v77
    %v79 = vrot.slane %v78, 1
    %v80 = vadd.f32 %v78, %v79
    %v81 = vrot.slane %v74, 4
    %v82 = vadd.f32 %v74, %v81
    %v83 = vrot.slane %v82, 2
    %v84 = vadd.f32 %v82, %v83
    %v85 = vrot.slane %v84, 1
    %v86 = vadd.f32 %v84, %v85
    %p87 = scmp.eq.s32.totalorder 0, 0
    // Predicated region
    $region18: #{tpu_custom_call.1} parent=1 // pred_check
      %p88 = pneg %p87
    $region19: #{tpu_custom_call.1} parent=1 // pred_check_branch
      %90 = sbr.rel (%p88) target = $region21
    $region20: #{tpu_custom_call.1} parent=1 // pred_region
      %vm93 = vcmask 1041409
      %v94 = vsel %vm93, %v72, %v66
      %96 = vst [vmem:[#allocation7] sm:$0x3] %v94
      %v99 = vsel %vm93, %v86, %v80
      %101 = vst [vmem:[#allocation8] sm:$0x3] %v99
    $region21: #{tpu_custom_call.1} parent=1 // pred_fallthru
      _
    %p102 = scmp.gt.s32.totalorder 0, 0
    // Predicated region
    $region22: #{tpu_custom_call.1} parent=1 // pred_check
      %p103 = pneg %p102
    $region23: #{tpu_custom_call.1} parent=1 // pred_check_branch
      %105 = sbr.rel (%p103) target = $region25
    $region24: #{tpu_custom_call.1} parent=1 // pred_region
      %v106 = vld [vmem:[#allocation7] sm:$0x3]
      %vm109 = vcmask 1041409
      %v110 = vsel %vm109, %v72, %v66
      %v112 = vadd.f32 %v106, %v110
      %113 = vst [vmem:[#allocation7] sm:$0x3] %v112
      %v114 = vld [vmem:[#allocation8] sm:$0x3]
      %v117 = vsel %vm109, %v86, %v80
      %v119 = vadd.f32 %v114, %v117
      %120 = vst [vmem:[#allocation8] sm:$0x3] %v119
    $region25: #{tpu_custom_call.1} parent=1 // pred_fallthru
      _
    // Predicated region
    $region26: #{tpu_custom_call.1} parent=1 // pred_check
      _
    $region27: #{tpu_custom_call.1} parent=1 // pred_check_branch
      %122 = sbr.rel (0) target = $region29
    $region28: #{tpu_custom_call.1} parent=1 // pred_region
      %s124 = ssub.s32 32, 32
      %125 = vsyncadd [#allocation4], %s124
      %s127 = sshll.u32 [#allocation7], 4
      %s128 = int_to_ptr.vmem [resolvable:$true] %s127
      %130 = dma.vmem_to_hbm [thread:$0]  %s128, 32, %s2, [#allocation4]
    $region29: #{tpu_custom_call.1} parent=1 // pred_fallthru
      _
    // Predicated region
    $region30: #{tpu_custom_call.1} parent=1 // pred_check
      _
    $region31: #{tpu_custom_call.1} parent=1 // pred_check_branch
      %132 = sbr.rel (0) target = $region33
    $region32: #{tpu_custom_call.1} parent=1 // pred_region
      %s134 = ssub.s32 32, 32
      %135 = vsyncadd [#allocation9], %s134
      %s137 = sshll.u32 [#allocation8], 4
      %s138 = int_to_ptr.vmem [resolvable:$true] %s137
      %140 = dma.vmem_to_hbm [thread:$0]  %s138, 32, %s3, [#allocation9]
    $region33: #{tpu_custom_call.1} parent=1 // pred_fallthru
      _
    // Predicated region
    $region34: #{tpu_custom_call.1} parent=1 // pred_check
      _
    $region35: #{tpu_custom_call.1} parent=1 // pred_check_branch
      %142 = sbr.rel (0) target = $region37
    $region36: #{tpu_custom_call.1} parent=1 // pred_region
      %143 = dma.done [#allocation4], 32
    $region37: #{tpu_custom_call.1} parent=1 // pred_fallthru
      _
    // Predicated region
    $region38: #{tpu_custom_call.1} parent=1 // pred_check
      _
    $region39: #{tpu_custom_call.1} parent=1 // pred_check_branch
      %145 = sbr.rel (0) target = $region41
    $region40: #{tpu_custom_call.1} parent=1 // pred_region
      %146 = dma.done [#allocation9], 32
    $region41: #{tpu_custom_call.1} parent=1 // pred_fallthru
      _
    %147 = vsyncpa [#allocation3], 1
    %148 = vsyncpa [#allocation6], 1
    %149 = vsyncpa [#allocation4], 1
    %150 = vsyncpa [#allocation9], 1

</llo_original>
